<compile_context>
chip_gen: v5e
topology: v5e:2x2
jax: 0.10.0
libtpu: 0.0.40
codegen_flags: <defaults>
</compile_context>

<pallas_src>
import math

import jax
import jax.numpy as jnp
from jax.experimental import pallas as pl
from jax.experimental.pallas import tpu as pltpu


# ----------------------------- kernels ------------------------------------- #

def _sub_kernel(x_ref, y_ref, o_ref):
    # Cast to the promoted output dtype in-kernel (free on the VPU slot here).
    o_ref[...] = x_ref[...].astype(o_ref.dtype) - y_ref[...].astype(o_ref.dtype)


def _sub_tensor_scalar_kernel(t_ref, s_ref, o_ref):
    # out = t - s ; s is a (1,1) f32/int32 SMEM scalar, cast in-kernel.
    o_ref[...] = t_ref[...].astype(o_ref.dtype) - s_ref[0, 0].astype(o_ref.dtype)


def _sub_scalar_tensor_kernel(t_ref, s_ref, o_ref):
    # out = s - t
    o_ref[...] = s_ref[0, 0].astype(o_ref.dtype) - t_ref[...].astype(o_ref.dtype)


# ----------------------------- tiling helpers ------------------------------ #

_LANE_CANDIDATES = (1024, 512, 256, 128)   # wide last dim -> unmasked lane-dense vst
_TARGET_BLOCK_BYTES = 4 << 20              # ~4 MiB / operand block
_MAX_SINGLE_BLOCK_BYTES = 8 << 20          # single-block fallback cap
_VMEM_LIMIT_BYTES = 48 << 20               # fits v7x (64 MiB) / v6e / v5e
_MIN_PALLAS_ELEMS = 1 << 19                # below ~0.5M elems, fused XLA sub wins
_MIN_GRID_BLOCKS = 4                       # keep both v7x TCs + DMA pipeline busy


def _sublane_multiple(*dtypes):
    """8 for 32-bit, 16 for 16-bit, 32 for 8-bit (row-packing of narrow dtypes)."""
    min_item = min(jnp.dtype(d).itemsize for d in dtypes)
    return 8 * max(1, 4 // max(1, min_item))


def _choose_lanes(total, sublane_mult):
    best = None
    for c in _LANE_CANDIDATES:
        if total % c:
            continue
        if (total // c) % sublane_mult == 0:
            return c
        if best is None:
            best = c
    return best


def _divisors(n):
    ds, i = [], 1
    while i * i <= n:
        if n % i == 0:
            ds.append(i)
            ds.append(n // i)
        i += 1
    return ds


def _pick_tile_rows(g_rows, rows_out, lanes, sublane_mult, itemsize_max):
    """Largest tile_rows that divides g_rows, is a sublane multiple, fits the
    block-byte budget and leaves a multi-block grid. None if nothing sane."""
    byte_cap = max(1, _TARGET_BLOCK_BYTES // (lanes * itemsize_max))
    grid_cap = max(1, rows_out // _MIN_GRID_BLOCKS)
    cap = min(byte_cap, grid_cap)
    cands = [d for d in _divisors(g_rows) if d % sublane_mult == 0 and d <= cap]
    if not cands:
        return None
    tile = max(cands)
    # Reject tilings whose blocks are so small that per-step overhead dominates.
    if (rows_out // tile) > 16 and tile * lanes * itemsize_max < (256 << 10):
        return None
    return tile


def _leading_broadcast_period(op_shape, out_shape):
    """If broadcasting `op` to out_shape only tiles its flat data along the
    leading axis, return the flat period (= op.size); else None."""
    nd = len(out_shape)
    padded = (1,) * (nd - len(op_shape)) + tuple(op_shape)
    k = 0
    while k < nd and padded[k] == 1:
        k += 1
    if tuple(padded[k:]) == tuple(out_shape[k:]):
        return math.prod(padded[k:]) if k < nd else 1
    return None


# ----------------------------- pallas_call wrappers ------------------------ #

def _pallas_sub_2d(x2d, y2d, rows_out, lanes, tile_rows, out_dtype,
                   total, bytes_accessed):
    nbx = x2d.shape[0] // tile_rows
    nby = y2d.shape[0] // tile_rows
    grid = (rows_out // tile_rows,)
    # TODO(synk): when one operand is a small repeated period, a 2-D grid with
    # the period axis outer would keep it VMEM-resident and cut its HBM reads.
    return pl.pallas_call(
        _sub_kernel,
        out_shape=jax.ShapeDtypeStruct((rows_out, lanes), out_dtype),
        grid_spec=pltpu.PrefetchScalarGridSpec(
            num_scalar_prefetch=0,
            grid=grid,
            in_specs=[
                pl.BlockSpec((tile_rows, lanes), lambda i, nb=nbx: (i % nb, 0)),
                pl.BlockSpec((tile_rows, lanes), lambda i, nb=nby: (i % nb, 0)),
            ],
            out_specs=pl.BlockSpec((tile_rows, lanes), lambda i: (i, 0)),
        ),
        compiler_params=pltpu.CompilerParams(
            dimension_semantics=("parallel",),
            vmem_limit_bytes=_VMEM_LIMIT_BYTES,
        ),
        cost_estimate=pl.CostEstimate(
            flops=total, transcendentals=0, bytes_accessed=bytes_accessed),
    )(x2d, y2d)


def _pallas_sub_scalar(t2d, s11, scalar_on_rhs, rows, lanes, tile_rows,
                       out_dtype, total, bytes_accessed):
    kernel = _sub_tensor_scalar_kernel if scalar_on_rhs else _sub_scalar_tensor_kernel
    grid = (rows // tile_rows,)
    return pl.pallas_call(
        kernel,
        out_shape=jax.ShapeDtypeStruct((rows, lanes), out_dtype),
        grid_spec=pltpu.PrefetchScalarGridSpec(
            num_scalar_prefetch=0,
            grid=grid,
            in_specs=[
                pl.BlockSpec((tile_rows, lanes), lambda i: (i, 0)),
                pl.BlockSpec(memory_space=pltpu.MemorySpace.SMEM),
            ],
            out_specs=pl.BlockSpec((tile_rows, lanes), lambda i: (i, 0)),
        ),
        compiler_params=pltpu.CompilerParams(
            dimension_semantics=("parallel",),
            vmem_limit_bytes=_VMEM_LIMIT_BYTES,
        ),
        cost_estimate=pl.CostEstimate(
            flops=total, transcendentals=0, bytes_accessed=bytes_accessed),
    )(t2d, s11)


# ----------------------------- public wrapper ------------------------------ #

def pallas_sub(x, y):
    """Elementwise x - y with torch/numpy broadcasting semantics (Sub.forward)."""
    x = jnp.asarray(x)
    y = jnp.asarray(y)
    out_shape = jnp.broadcast_shapes(x.shape, y.shape)
    # result_type on values (not dtypes) so weak python scalars promote like torch.
    # TODO(synk): jnp.result_type still differs from torch promotion for some
    # mixed-integer combinations (e.g. uint8 vs int8).
    out_dtype = jnp.result_type(x, y)
    total = math.prod(out_shape) if out_shape else 1

    def _xla():
        return (x - y).astype(out_dtype)

    if total < _MIN_PALLAS_ELEMS:
        return _xla()
    if not (jnp.issubdtype(out_dtype, jnp.floating)
            or jnp.issubdtype(out_dtype, jnp.integer)):
        return _xla()

    sub_mult = _sublane_multiple(x.dtype, y.dtype, out_dtype)
    lanes = _choose_lanes(total, sub_mult)
    if lanes is None:
        # Element count not a multiple of 128: no padding-free lane-dense view.
        return _xla()
    rows_out = total // lanes
    itemsize_max = max(jnp.dtype(d).itemsize for d in (x.dtype, y.dtype, out_dtype))
    bytes_accessed = int(x.size * jnp.dtype(x.dtype).itemsize
                         + y.size * jnp.dtype(y.dtype).itemsize
                         + total * jnp.dtype(out_dtype).itemsize)

    # ---- scalar operand on either side: SMEM fast path --------------------- #
    if x.size == 1 or y.size == 1:
        tile_rows = _pick_tile_rows(rows_out, rows_out, lanes, sub_mult, itemsize_max)
        if tile_rows is None:
            if rows_out * lanes * itemsize_max <= _MAX_SINGLE_BLOCK_BYTES:
                tile_rows = rows_out
            else:
                return _xla()
        smem_dtype = (jnp.float32 if jnp.issubdtype(out_dtype, jnp.floating)
                      else jnp.int32)
        if y.size == 1:
            t2d = x.reshape(rows_out, lanes)
            s11 = y.reshape(1, 1).astype(smem_dtype)
            out2d = _pallas_sub_scalar(t2d, s11, True, rows_out, lanes, tile_rows,
                                       out_dtype, total, bytes_accessed)
        else:
            t2d = y.reshape(rows_out, lanes)
            s11 = x.reshape(1, 1).astype(smem_dtype)
            out2d = _pallas_sub_scalar(t2d, s11, False, rows_out, lanes, tile_rows,
                                       out_dtype, total, bytes_accessed)
        return out2d.reshape(out_shape)

    # ---- tensor-tensor path ------------------------------------------------ #
    def _rows_for(op):
        if op.size == total:
            return total // lanes, op
        p = _leading_broadcast_period(op.shape, out_shape)
        if p is not None and p % lanes == 0:
            return p // lanes, op                     # keep true size, pin by modulo
        return rows_out, jnp.broadcast_to(op, out_shape)   # interior broadcast

    rows_x, xe = _rows_for(x)
    rows_y, ye = _rows_for(y)
    g = math.gcd(rows_x, rows_y)
    tile_rows = _pick_tile_rows(g, rows_out, lanes, sub_mult, itemsize_max)
    if tile_rows is None and (rows_x != rows_out or rows_y != rows_out):
        # Retry with both operands materialized to the full output size.
        xe = jnp.broadcast_to(x, out_shape)
        ye = jnp.broadcast_to(y, out_shape)
        rows_x = rows_y = rows_out
        tile_rows = _pick_tile_rows(rows_out, rows_out, lanes, sub_mult, itemsize_max)
    if tile_rows is None:
        if rows_out * lanes * itemsize_max <= _MAX_SINGLE_BLOCK_BYTES:
            tile_rows = rows_out
        else:
            return _xla()

    out2d = _pallas_sub_2d(xe.reshape(rows_x, lanes), ye.reshape(rows_y, lanes),
                           rows_out, lanes, tile_rows, out_dtype,
                           total, bytes_accessed)
    return out2d.reshape(out_shape)


# ----------------------------- self-test ----------------------------------- #

if __name__ == "__main__":
    key = jax.random.PRNGKey(0)
    kx, ky, kz = jax.random.split(key, 3)

    # 1) SMALL NCHW shape consistent with the module (XLA fallback path).
    xs = jax.random.normal(kx, (2, 4, 16, 16), dtype=jnp.float32)
    ys = jax.random.normal(ky, (2, 4, 16, 16), dtype=jnp.float32)
    out_s = pallas_sub(xs, ys)
    jax.block_until_ready(out_s)
    assert out_s.shape == (2, 4, 16, 16)
    assert jnp.allclose(out_s, xs - ys, atol=1e-6), "small-shape mismatch"

    # 2) Same-shape subtraction through the Pallas kernel (>= 0.5M elements).
    x = jax.random.normal(kx, (2, 4, 256, 256), dtype=jnp.float32)
    y = jax.random.normal(ky, (2, 4, 256, 256), dtype=jnp.float32)
    out = pallas_sub(x, y)
    jax.block_until_ready(out)
    assert jnp.allclose(out, x - y, atol=1e-6), "same-shape Pallas mismatch"

    # 3) Mixed dtypes (bf16 - f32): in-kernel cast, no pre-upcast in HBM.
    xb = x.astype(jnp.bfloat16)
    out_m = pallas_sub(xb, y)
    jax.block_until_ready(out_m)
    assert out_m.dtype == jnp.float32
    assert jnp.allclose(out_m, xb.astype(jnp.float32) - y, atol=1e-5), \
        "mixed-dtype mismatch"

    # 4) Leading-dim broadcast of y: modulo-pinned index_map, no broadcast_to.
    yl = jax.random.normal(kz, (4, 256, 256), dtype=jnp.float32)
    out_b = pallas_sub(x, yl)
    jax.block_until_ready(out_b)
    assert jnp.allclose(out_b, x - yl, atol=1e-6), "leading-broadcast mismatch"

    # 5) Scalar y (SMEM path) and scalar x (symmetric SMEM path).
    out_sy = pallas_sub(x, jnp.float32(0.5))
    jax.block_until_ready(out_sy)
    assert jnp.allclose(out_sy, x - 0.5, atol=1e-6), "scalar-y mismatch"
    out_sx = pallas_sub(jnp.float32(2.0), y)
    jax.block_until_ready(out_sx)
    assert jnp.allclose(out_sx, 2.0 - y, atol=1e-6), "scalar-x mismatch"

    print("KERNEL_OK")
</pallas_src>

<mosaic_0001>
module attributes {stable_mosaic.version = 11 : i64} {
  func.func @_sub_kernel(%arg0: i32, %arg1: memref<128x1024xf32, #tpu.memory_space<vmem>>, %arg2: memref<128x1024xf32, #tpu.memory_space<vmem>>, %arg3: memref<128x1024xf32, #tpu.memory_space<vmem>>) attributes {dimension_semantics = [#tpu.dimension_semantics<parallel>], iteration_bounds = array<i64: 4>, scalar_prefetch = 0 : i64, scratch_operands = 0 : i64, tpu.core_type = #tpu.core_type<tc>, window_params = [{transform_indices = @transform_0, window_bounds = array<i64: 128, 1024>}, {transform_indices = @transform_1, window_bounds = array<i64: 128, 1024>}, {transform_indices = @transform_2, window_bounds = array<i64: 128, 1024>}]} {
    %c0 = arith.constant 0 : index
    %c0_0 = arith.constant 0 : index
    %0 = vector.load %arg1[%c0, %c0_0] : memref<128x1024xf32, #tpu.memory_space<vmem>>, vector<128x1024xf32>
    %c0_1 = arith.constant 0 : index
    %c0_2 = arith.constant 0 : index
    %1 = vector.load %arg2[%c0_1, %c0_2] : memref<128x1024xf32, #tpu.memory_space<vmem>>, vector<128x1024xf32>
    %2 = arith.subf %0, %1 : vector<128x1024xf32>
    %c0_3 = arith.constant 0 : index
    %c0_4 = arith.constant 0 : index
    %3 = vector.load %arg3[%c0_3, %c0_4] : memref<128x1024xf32, #tpu.memory_space<vmem>>, vector<128x1024xf32>
    tpu.vector_store %arg3[%c0_3, %c0_4], %2 {strides = array<i32>} : memref<128x1024xf32, #tpu.memory_space<vmem>>, vector<128x1024xf32>,
    return
  }
  func.func @transform_0(%arg0: i32) -> (i32, i32) {
    %c4_i32 = arith.constant 4 : i32
    %c0_i32 = arith.constant 0 : i32
    %0 = arith.cmpi eq, %c4_i32, %c0_i32 : i32
    %c1_i32 = arith.constant 1 : i32
    %1 = arith.select %0, %c1_i32, %c4_i32 : i32
    %2 = arith.remsi %arg0, %1 : i32
    %c0_i32_0 = arith.constant 0 : i32
    %3 = arith.cmpi ne, %2, %c0_i32_0 : i32
    %c0_i32_1 = arith.constant 0 : i32
    %4 = arith.cmpi slt, %2, %c0_i32_1 : i32
    %c0_i32_2 = arith.constant 0 : i32
    %5 = arith.cmpi slt, %1, %c0_i32_2 : i32
    %6 = arith.xori %4, %5 : i1
    %7 = arith.andi %6, %3 : i1
    %8 = arith.addi %2, %1 : i32
    %9 = arith.select %7, %8, %2 : i32
    %c0_i32_3 = arith.constant 0 : i32
    %c0_i32_4 = arith.constant 0 : i32
    return %9, %c0_i32_3 : i32, i32
  }
  func.func @transform_1(%arg0: i32) -> (i32, i32) {
    %c4_i32 = arith.constant 4 : i32
    %c0_i32 = arith.constant 0 : i32
    %0 = arith.cmpi eq, %c4_i32, %c0_i32 : i32
    %c1_i32 = arith.constant 1 : i32
    %1 = arith.select %0, %c1_i32, %c4_i32 : i32
    %2 = arith.remsi %arg0, %1 : i32
    %c0_i32_0 = arith.constant 0 : i32
    %3 = arith.cmpi ne, %2, %c0_i32_0 : i32
    %c0_i32_1 = arith.constant 0 : i32
    %4 = arith.cmpi slt, %2, %c0_i32_1 : i32
    %c0_i32_2 = arith.constant 0 : i32
    %5 = arith.cmpi slt, %1, %c0_i32_2 : i32
    %6 = arith.xori %4, %5 : i1
    %7 = arith.andi %6, %3 : i1
    %8 = arith.addi %2, %1 : i32
    %9 = arith.select %7, %8, %2 : i32
    %c0_i32_3 = arith.constant 0 : i32
    %c0_i32_4 = arith.constant 0 : i32
    return %9, %c0_i32_3 : i32, i32
  }
  func.func @transform_2(%arg0: i32) -> (i32, i32) {
    %c0_i32 = arith.constant 0 : i32
    %c0_i32_0 = arith.constant 0 : i32
    return %arg0, %c0_i32 : i32, i32
  }
}

</mosaic_0001>

<llo_original>
// kernel: tpu_custom_call.1
$region0: #{tpu_custom_call.1}
  #allocation0 [shape = 'u32[]', space=smem, size = 0x4, offset = 0x4, fixed_abs, tag = 'smem constant byte address 0x4 - core index']
  #allocation1 [shape = 'u32[72,128]{1,0:T(1,128)}', space=vmem, size = 0x9000, scoped, tag = 'internal scratch']
  %s0 = inlined_call_operand.hbm [shape: f32[512,1024], index: 0, kind: input, shape index: {}]
  %s1 = inlined_call_operand.hbm [shape: f32[512,1024], index: 1, kind: input, shape index: {}]
  %s2 = inlined_call_operand.hbm [shape: f32[512,1024], index: 2, kind: output, shape index: {}]
  %s3 = sld [smem:[#allocation0]]
  $region49: #{tpu_custom_call.1} parent=0
    _
  %s5 = ssub.s32 1, %s3
  %s6 = scalar_select 0, %s5, %s3
  $region1: #{tpu_custom_call.1} parent=0
    #allocation2 [shape = 'u8[1048576]{0}', space=vmem, size = 0x100000, scoped, tag = 'input window, operand 0']
    #allocation3 [shape = 's32[2]{0}', space=sflag, size = 0x8, scoped, tag = 'scoped memory for tpu_custom_call.1']
    #allocation4 [shape = 's32[2]{0}', space=sflag, size = 0x8, scoped, tag = 'scoped memory for tpu_custom_call.1']
    #allocation5 [shape = 'u8[1048576]{0}', space=vmem, size = 0x100000, scoped, tag = 'input window, operand 1']
    #allocation6 [shape = 's32[2]{0}', space=sflag, size = 0x8, scoped, tag = 'scoped memory for tpu_custom_call.1']
    #allocation7 [shape = 'u8[1048576]{0}', space=vmem, size = 0x100000, scoped, tag = 'output window, operand 0']
    %7 = vsyncpa [#allocation3], 0
    %s8 = scalar_lea.sflag [#allocation3], 1
    %9 = vsyncpa %s8, 0
    %10 = vsyncpa [#allocation6], 0
    %s11 = scalar_lea.sflag [#allocation6], 1
    %12 = vsyncpa %s11, 0
    %13 = vsyncpa [#allocation4], 0
    %s14 = scalar_lea.sflag [#allocation4], 1
    %15 = vsyncpa %s14, 0
    loop: start=0, step=1, limit=6
    $region2: #{tpu_custom_call.1} parent=1 // loop_pre_header
      _
    $region3: #{tpu_custom_call.1} parent=1 // loop_header
      %s17 = sphi 0, %s21
      %p18 = scmp.ge.s32.totalorder %s17, 6
      %s51 = sphi 0, %s53
      %s54 = sphi 0, %s51
      %s55 = sphi 0, %s54
      %s71 = sphi 0, %s55
      %s101 = sphi 0, %s103
      %s104 = sphi 0, %s101
      %s105 = sphi 0, %s104
      %s121 = sphi 0, %s105
      %s127 = sphi 0, %s129
      %s130 = sphi 0, %s127
      %s131 = sphi 0, %s130
      %s147 = sphi 0, %s131
    $region4: #{tpu_custom_call.1} parent=1 // loop_header_branch
      %20 = sbr.rel (%p18) target = $region8
    $region5: #{tpu_custom_call.1} parent=1 // loop_body
      %s22 = ssub.s32 %s17, 1
      %s23 = ssub.s32 %s17, 2
      %s24 = sadd.s32 %s17, 1
      %p25 = scmp.lt.s32.totalorder %s17, 0
      %s26 = ssub.s32 0, %s17
      %s27 = scalar_select %p25, %s26, %s17
      %s28 = sand.u32 %s27, 3
      %s29 = ssub.s32 0, %s28
      %s30 = scalar_select %p25, %s29, %s28
      %p31 = scmp.ne.s32.totalorder %s30, 0
      %p32 = scmp.lt.s32.totalorder %s30, 0
      %p33 = pnand %p32, %p31
      %p34 = pneg %p33
      %s35 = sadd.s32 %s30, 4
      %s36 = scalar_select %p34, %s35, %s30
      %p37 = scmp.lt.s32.totalorder %s24, 0
      %s38 = ssub.s32 0, %s24
      %s39 = scalar_select %p37, %s38, %s24
      %s40 = sand.u32 %s39, 3
      %s41 = ssub.s32 0, %s40
      %s42 = scalar_select %p37, %s41, %s40
      %p43 = scmp.ne.s32.totalorder %s42, 0
      %p44 = scmp.lt.s32.totalorder %s42, 0
      %p45 = pnand %p44, %p43
      %p46 = pneg %p45
      %s47 = sadd.s32 %s42, 4
      %s48 = scalar_select %p46, %s47, %s42
      %s49 = ssub.s32 %s36, %s48
      %p50 = scmp.eq.s32.totalorder %s49, 0
      %s52 = sadd.s32 %s51, 1
      %s53 = scalar_select %p50, %s51, %s52
      %p56 = pneg %p50
      %p57 = scmp.eq.s32.totalorder %s17, 3
      %p58 = por %p56, %p57
      %p59 = scmp.ne.s32.totalorder %s51, %s54
      %p60 = scmp.eq.s32.totalorder %s17, 0
      %p61 = por %p59, %p60
      %p62 = scmp.ne.s32.totalorder %s51, %s54
      %p63 = scmp.eq.s32.totalorder %s22, 3
      %p64 = por %p62, %p63
      %p65 = scmp.ne.s32.totalorder %s54, %s55
      %p66 = scmp.eq.s32.totalorder %s22, 0
      %p67 = por %p65, %p66
      %p68 = scmp.ne.s32.totalorder %s54, %s55
      %p69 = scmp.eq.s32.totalorder %s23, 3
      %p70 = por %p68, %p69
      %p72 = scmp.ne.s32.totalorder %s55, %s71
      %p73 = scmp.eq.s32.totalorder %s23, 0
      %p74 = por %p72, %p73
      %p75 = scmp.lt.s32.totalorder %s17, 0
      %s76 = ssub.s32 0, %s17
      %s77 = scalar_select %p75, %s76, %s17
      %s78 = sand.u32 %s77, 3
      %s79 = ssub.s32 0, %s78
      %s80 = scalar_select %p75, %s79, %s78
      %p81 = scmp.ne.s32.totalorder %s80, 0
      %p82 = scmp.lt.s32.totalorder %s80, 0
      %p83 = pnand %p82, %p81
      %p84 = pneg %p83
      %s85 = sadd.s32 %s80, 4
      %s86 = scalar_select %p84, %s85, %s80
      %p87 = scmp.lt.s32.totalorder %s24, 0
      %s88 = ssub.s32 0, %s24
      %s89 = scalar_select %p87, %s88, %s24
      %s90 = sand.u32 %s89, 3
      %s91 = ssub.s32 0, %s90
      %s92 = scalar_select %p87, %s91, %s90
      %p93 = scmp.ne.s32.totalorder %s92, 0
      %p94 = scmp.lt.s32.totalorder %s92, 0
      %p95 = pnand %p94, %p93
      %p96 = pneg %p95
      %s97 = sadd.s32 %s92, 4
      %s98 = scalar_select %p96, %s97, %s92
      %s99 = ssub.s32 %s86, %s98
      %p100 = scmp.eq.s32.totalorder %s99, 0
      %s102 = sadd.s32 %s101, 1
      %s103 = scalar_select %p100, %s101, %s102
      %p106 = pneg %p100
      %p107 = scmp.eq.s32.totalorder %s17, 3
      %p108 = por %p106, %p107
      %p109 = scmp.ne.s32.totalorder %s101, %s104
      %p110 = scmp.eq.s32.totalorder %s17, 0
      %p111 = por %p109, %p110
      %p112 = scmp.ne.s32.totalorder %s101, %s104
      %p113 = scmp.eq.s32.totalorder %s22, 3
      %p114 = por %p112, %p113
      %p115 = scmp.ne.s32.totalorder %s104, %s105
      %p116 = scmp.eq.s32.totalorder %s22, 0
      %p117 = por %p115, %p116
      %p118 = scmp.ne.s32.totalorder %s104, %s105
      %p119 = scmp.eq.s32.totalorder %s23, 3
      %p120 = por %p118, %p119
      %p122 = scmp.ne.s32.totalorder %s105, %s121
      %p123 = scmp.eq.s32.totalorder %s23, 0
      %p124 = por %p122, %p123
      %s125 = ssub.s32 %s17, %s24
      %p126 = scmp.eq.s32.totalorder %s125, 0
      %s128 = sadd.s32 %s127, 1
      %s129 = scalar_select %p126, %s127, %s128
      %p132 = pneg %p126
      %p133 = scmp.eq.s32.totalorder %s17, 3
      %p134 = por %p132, %p133
      %p135 = scmp.ne.s32.totalorder %s127, %s130
      %p136 = scmp.eq.s32.totalorder %s17, 0
      %p137 = por %p135, %p136
      %p138 = scmp.ne.s32.totalorder %s127, %s130
      %p139 = scmp.eq.s32.totalorder %s22, 3
      %p140 = por %p138, %p139
      %p141 = scmp.ne.s32.totalorder %s130, %s131
      %p142 = scmp.eq.s32.totalorder %s22, 0
      %p143 = por %p141, %p142
      %p144 = scmp.ne.s32.totalorder %s130, %s131
      %p145 = scmp.eq.s32.totalorder %s23, 3
      %p146 = por %p144, %p145
      %p148 = scmp.ne.s32.totalorder %s131, %s147
      %p149 = scmp.eq.s32.totalorder %s23, 0
      %p150 = por %p148, %p149
      %p151 = scmp.le.s32.totalorder 1, %s17
      %p152 = scmp.lt.s32.totalorder %s17, 5
      %p153 = pnand %p151, %p152
      %p154 = pneg %p153
      // Predicated region
      $region9: #{tpu_custom_call.1} parent=5 // pred_check
        _
      $region10: #{tpu_custom_call.1} parent=5 // pred_check_branch
        %156 = sbr.rel (%p153) target = $region12
      $region11: #{tpu_custom_call.1} parent=5 // pred_region
        %s157 = ssub.s32 %s17, 1
      $region12: #{tpu_custom_call.1} parent=5 // pred_fallthru
        _
      %p158 = scmp.lt.s32.totalorder %s17, 4
      // Predicated region
      $region13: #{tpu_custom_call.1} parent=5 // pred_check
        %p159 = pneg %p158
      $region14: #{tpu_custom_call.1} parent=5 // pred_check_branch
        %161 = sbr.rel (%p159) target = $region16
      $region15: #{tpu_custom_call.1} parent=5 // pred_region
        // Predicated region
        $region17: #{tpu_custom_call.1} parent=15 // pred_check
          %p162 = pneg %p61
        $region18: #{tpu_custom_call.1} parent=15 // pred_check_branch
          %164 = sbr.rel (%p162) target = $region20
        $region19: #{tpu_custom_call.1} parent=15 // pred_region
          %s165 = sand.u32 %s51, 1
          %s166 = scalar_lea.sflag [#allocation3], %s165
          %s167 = sand.u32 %s51, 1
          %s168 = smul.addr %s167, 1024
          %s169 = scalar_lea.vmem [#allocation2], %s168
          %p170 = scmp.lt.s32.totalorder %s17, 0
          %s171 = ssub.s32 0, %s17
          %s172 = scalar_select %p170, %s171, %s17
          %s173 = sand.u32 %s172, 3
          %s174 = ssub.s32 0, %s173
          %s175 = scalar_select %p170, %s174, %s173
          %p176 = scmp.ne.s32.totalorder %s175, 0
          %p177 = scmp.lt.s32.totalorder %s175, 0
          %p178 = pnand %p177, %p176
          %p179 = pneg %p178
          %s180 = sadd.s32 %s175, 4
          %s181 = scalar_select %p179, %s180, %s175
          %s182 = smul.u32 16, %s181
          %184 = vsyncadd %s166, 0
          %s185 = smul.addr %s182, 8
          %s186 = smul.addr %s185, 8
          %s187 = scalar_lea.hbm %s0, %s186
          %s188 = sshll.u32 %s187, 4
          %s189 = int_to_ptr.hbm [resolvable:$true] %s188
          %s190 = sshll.u32 %s169, 4
          %s191 = int_to_ptr.vmem [resolvable:$true] %s190
          %196 = dma.hbm_to_vmem [thread:$0]  %s189, 16384, %s191, %s166, 1024, 1024, 64
        $region20: #{tpu_custom_call.1} parent=15 // pred_fallthru
          _
        // Predicated region
        $region21: #{tpu_custom_call.1} parent=15 // pred_check
          %p197 = pneg %p111
        $region22: #{tpu_custom_call.1} parent=15 // pred_check_branch
          %199 = sbr.rel (%p197) target = $region24
        $region23: #{tpu_custom_call.1} parent=15 // pred_region
          %s200 = sand.u32 %s101, 1
          %s201 = scalar_lea.sflag [#allocation6], %s200
          %s202 = sand.u32 %s101, 1
          %s203 = smul.addr %s202, 1024
          %s204 = scalar_lea.vmem [#allocation5], %s203
          %p205 = scmp.lt.s32.totalorder %s17, 0
          %s206 = ssub.s32 0, %s17
          %s207 = scalar_select %p205, %s206, %s17
          %s208 = sand.u32 %s207, 3
          %s209 = ssub.s32 0, %s208
          %s210 = scalar_select %p205, %s209, %s208
          %p211 = scmp.ne.s32.totalorder %s210, 0
          %p212 = scmp.lt.s32.totalorder %s210, 0
          %p213 = pnand %p212, %p211
          %p214 = pneg %p213
          %s215 = sadd.s32 %s210, 4
          %s216 = scalar_select %p214, %s215, %s210
          %s217 = smul.u32 16, %s216
          %219 = vsyncadd %s201, 0
          %s220 = smul.addr %s217, 8
          %s221 = smul.addr %s220, 8
          %s222 = scalar_lea.hbm %s1, %s221
          %s223 = sshll.u32 %s222, 4
          %s224 = int_to_ptr.hbm [resolvable:$true] %s223
          %s225 = sshll.u32 %s204, 4
          %s226 = int_to_ptr.vmem [resolvable:$true] %s225
          %231 = dma.hbm_to_vmem [thread:$0]  %s224, 16384, %s226, %s201, 1024, 1024, 64
        $region24: #{tpu_custom_call.1} parent=15 // pred_fallthru
          _
      $region16: #{tpu_custom_call.1} parent=5 // pred_fallthru
        _
      %p232 = scmp.le.s32.totalorder 1, %s17
      %p233 = scmp.lt.s32.totalorder %s17, 5
      %p234 = pnand %p232, %p233
      %p235 = pneg %p234
      // Predicated region
      $region25: #{tpu_custom_call.1} parent=5 // pred_check
        _
      $region26: #{tpu_custom_call.1} parent=5 // pred_check_branch
        %237 = sbr.rel (%p234) target = $region28
      $region27: #{tpu_custom_call.1} parent=5 // pred_region
        %s238 = ssub.s32 %s17, 1
        %s239 = sand.u32 %s54, 1
        %s240 = scalar_lea.sflag [#allocation3], %s239
        %s241 = sand.u32 %s54, 1
        %s242 = smul.addr %s241, 1024
        %s243 = scalar_lea.vmem [#allocation2], %s242
        // Predicated region
        $region29: #{tpu_custom_call.1} parent=27 // pred_check
          %p244 = pneg %p67
        $region30: #{tpu_custom_call.1} parent=27 // pred_check_branch
          %246 = sbr.rel (%p244) target = $region32
        $region31: #{tpu_custom_call.1} parent=27 // pred_region
          %248 = dma.done %s240, 16384
        $region32: #{tpu_custom_call.1} parent=27 // pred_fallthru
          _
        %s249 = sand.u32 %s104, 1
        %s250 = scalar_lea.sflag [#allocation6], %s249
        %s251 = sand.u32 %s104, 1
        %s252 = smul.addr %s251, 1024
        %s253 = scalar_lea.vmem [#allocation5], %s252
        // Predicated region
        $region33: #{tpu_custom_call.1} parent=27 // pred_check
          %p254 = pneg %p117
        $region34: #{tpu_custom_call.1} parent=27 // pred_check_branch
          %256 = sbr.rel (%p254) target = $region36
        $region35: #{tpu_custom_call.1} parent=27 // pred_region
          %258 = dma.done %s250, 16384
        $region36: #{tpu_custom_call.1} parent=27 // pred_fallthru
          _
        %s259 = sand.u32 %s54, 1
        %s260 = scalar_lea.sflag [#allocation3], %s259
        %s261 = sand.u32 %s54, 1
        %s262 = smul.addr %s261, 1024
        %s263 = scalar_lea.vmem [#allocation2], %s262
        %p264 = pneg %p67
        %p265 = pneg %p64
        %s266 = sand.u32 %s104, 1
        %s267 = scalar_lea.sflag [#allocation6], %s266
        %s268 = sand.u32 %s104, 1
        %s269 = smul.addr %s268, 1024
        %s270 = scalar_lea.vmem [#allocation5], %s269
        %p271 = pneg %p117
        %p272 = pneg %p114
        %p273 = pneg %p143
        %p274 = pneg %p140
        %s275 = sand.u32 %s130, 1
        %s276 = scalar_lea.sflag [#allocation4], %s275
        %s277 = sand.u32 %s130, 1
        %s278 = smul.addr %s277, 1024
        %s279 = scalar_lea.vmem [#allocation7], %s278
        %p280 = scmp.lt.s32.totalorder %s22, 0
        %s281 = ssub.s32 0, %s22
        %s282 = scalar_select %p280, %s281, %s22
        %s283 = sand.u32 %s282, 3
        %s284 = ssub.s32 0, %s283
        %s285 = scalar_select %p280, %s284, %s283
        %p286 = scmp.ne.s32.totalorder %s285, 0
        %p287 = scmp.lt.s32.totalorder %s285, 0
        %p288 = pnand %p287, %p286
        %p289 = pneg %p288
        %s290 = sadd.s32 %s285, 4
        %s291 = scalar_select %p289, %s290, %s285
        %s292 = smul.u32 16, %s291
        %p293 = scmp.lt.s32.totalorder %s22, 0
        %s294 = ssub.s32 0, %s22
        %s295 = scalar_select %p293, %s294, %s22
        %s296 = sand.u32 %s295, 3
        %s297 = ssub.s32 0, %s296
        %s298 = scalar_select %p293, %s297, %s296
        %p299 = scmp.ne.s32.totalorder %s298, 0
        %p300 = scmp.lt.s32.totalorder %s298, 0
        %p301 = pnand %p300, %p299
        %p302 = pneg %p301
        %s303 = sadd.s32 %s298, 4
        %s304 = scalar_select %p302, %s303, %s298
        %s305 = smul.u32 16, %s304
        %s306 = smul.u32 16, %s22
        %v307 = vld [vmem:[%s243] sm:$0xff]
        %v308 = vld [vmem:[%s243 + $0x8] sm:$0xff]
        %v309 = vld [vmem:[%s243 + $0x10] sm:$0xff]
        %v310 = vld [vmem:[%s243 + $0x18] sm:$0xff]
        %v311 = vld [vmem:[%s243 + $0x20] sm:$0xff]
        %v312 = vld [vmem:[%s243 + $0x28] sm:$0xff]
        %v313 = vld [vmem:[%s243 + $0x30] sm:$0xff]
        %v314 = vld [vmem:[%s243 + $0x38] sm:$0xff]
        %v315 = vld [vmem:[%s243 + $0x40] sm:$0xff]
        %v316 = vld [vmem:[%s243 + $0x48] sm:$0xff]
        %v317 = vld [vmem:[%s243 + $0x50] sm:$0xff]
        %v318 = vld [vmem:[%s243 + $0x58] sm:$0xff]
        %v319 = vld [vmem:[%s243 + $0x60] sm:$0xff]
        %v320 = vld [vmem:[%s243 + $0x68] sm:$0xff]
        %v321 = vld [vmem:[%s243 + $0x70] sm:$0xff]
        %v322 = vld [vmem:[%s243 + $0x78] sm:$0xff]
        %v323 = vld [vmem:[%s243 + $0x80] sm:$0xff]
        %v324 = vld [vmem:[%s243 + $0x88] sm:$0xff]
        %v325 = vld [vmem:[%s243 + $0x90] sm:$0xff]
        %v326 = vld [vmem:[%s243 + $0x98] sm:$0xff]
        %v327 = vld [vmem:[%s243 + $0xa0] sm:$0xff]
        %v328 = vld [vmem:[%s243 + $0xa8] sm:$0xff]
        %v329 = vld [vmem:[%s243 + $0xb0] sm:$0xff]
        %v330 = vld [vmem:[%s243 + $0xb8] sm:$0xff]
        %v331 = vld [vmem:[%s243 + $0xc0] sm:$0xff]
        %v332 = vld [vmem:[%s243 + $0xc8] sm:$0xff]
        %v333 = vld [vmem:[%s243 + $0xd0] sm:$0xff]
        %v334 = vld [vmem:[%s243 + $0xd8] sm:$0xff]
        %v335 = vld [vmem:[%s243 + $0xe0] sm:$0xff]
        %v336 = vld [vmem:[%s243 + $0xe8] sm:$0xff]
        %v337 = vld [vmem:[%s243 + $0xf0] sm:$0xff]
        %v338 = vld [vmem:[%s243 + $0xf8] sm:$0xff]
        %v339 = vld [vmem:[%s243 + $0x100] sm:$0xff]
        %v340 = vld [vmem:[%s243 + $0x108] sm:$0xff]
        %v341 = vld [vmem:[%s243 + $0x110] sm:$0xff]
        %v342 = vld [vmem:[%s243 + $0x118] sm:$0xff]
        %v343 = vld [vmem:[%s243 + $0x120] sm:$0xff]
        %v344 = vld [vmem:[%s243 + $0x128] sm:$0xff]
        %v345 = vld [vmem:[%s243 + $0x130] sm:$0xff]
        %v346 = vld [vmem:[%s243 + $0x138] sm:$0xff]
        %v347 = vld [vmem:[%s243 + $0x140] sm:$0xff]
        %v348 = vld [vmem:[%s243 + $0x148] sm:$0xff]
        %v349 = vld [vmem:[%s243 + $0x150] sm:$0xff]
        %v350 = vld [vmem:[%s243 + $0x158] sm:$0xff]
        %v351 = vld [vmem:[%s243 + $0x160] sm:$0xff]
        %v352 = vld [vmem:[%s243 + $0x168] sm:$0xff]
        %v353 = vld [vmem:[%s243 + $0x170] sm:$0xff]
        %v354 = vld [vmem:[%s243 + $0x178] sm:$0xff]
        %v355 = vld [vmem:[%s243 + $0x180] sm:$0xff]
        %v356 = vld [vmem:[%s243 + $0x188] sm:$0xff]
        %v357 = vld [vmem:[%s243 + $0x190] sm:$0xff]
        %v358 = vld [vmem:[%s243 + $0x198] sm:$0xff]
        %v359 = vld [vmem:[%s243 + $0x1a0] sm:$0xff]
        %v360 = vld [vmem:[%s243 + $0x1a8] sm:$0xff]
        %v361 = vld [vmem:[%s243 + $0x1b0] sm:$0xff]
        %v362 = vld [vmem:[%s243 + $0x1b8] sm:$0xff]
        %v363 = vld [vmem:[%s243 + $0x1c0] sm:$0xff]
        %v364 = vld [vmem:[%s243 + $0x1c8] sm:$0xff]
        %v365 = vld [vmem:[%s243 + $0x1d0] sm:$0xff]
        %v366 = vld [vmem:[%s243 + $0x1d8] sm:$0xff]
        %v367 = vld [vmem:[%s243 + $0x1e0] sm:$0xff]
        %v368 = vld [vmem:[%s243 + $0x1e8] sm:$0xff]
        %v369 = vld [vmem:[%s243 + $0x1f0] sm:$0xff]
        %v370 = vld [vmem:[%s243 + $0x1f8] sm:$0xff]
        %v371 = vld [vmem:[%s243 + $0x200] sm:$0xff]
        %v372 = vld [vmem:[%s243 + $0x208] sm:$0xff]
        %v373 = vld [vmem:[%s243 + $0x210] sm:$0xff]
        %v374 = vld [vmem:[%s243 + $0x218] sm:$0xff]
        %v375 = vld [vmem:[%s243 + $0x220] sm:$0xff]
        %v376 = vld [vmem:[%s243 + $0x228] sm:$0xff]
        %v377 = vld [vmem:[%s243 + $0x230] sm:$0xff]
        %v378 = vld [vmem:[%s243 + $0x238] sm:$0xff]
        %v379 = vld [vmem:[%s243 + $0x240] sm:$0xff]
        %v380 = vld [vmem:[%s243 + $0x248] sm:$0xff]
        %v381 = vld [vmem:[%s243 + $0x250] sm:$0xff]
        %v382 = vld [vmem:[%s243 + $0x258] sm:$0xff]
        %v383 = vld [vmem:[%s243 + $0x260] sm:$0xff]
        %v384 = vld [vmem:[%s243 + $0x268] sm:$0xff]
        %v385 = vld [vmem:[%s243 + $0x270] sm:$0xff]
        %v386 = vld [vmem:[%s243 + $0x278] sm:$0xff]
        %v387 = vld [vmem:[%s243 + $0x280] sm:$0xff]
        %v388 = vld [vmem:[%s243 + $0x288] sm:$0xff]
        %v389 = vld [vmem:[%s243 + $0x290] sm:$0xff]
        %v390 = vld [vmem:[%s243 + $0x298] sm:$0xff]
        %v391 = vld [vmem:[%s243 + $0x2a0] sm:$0xff]
        %v392 = vld [vmem:[%s243 + $0x2a8] sm:$0xff]
        %v393 = vld [vmem:[%s243 + $0x2b0] sm:$0xff]
        %v394 = vld [vmem:[%s243 + $0x2b8] sm:$0xff]
        %v395 = vld [vmem:[%s243 + $0x2c0] sm:$0xff]
        %v396 = vld [vmem:[%s243 + $0x2c8] sm:$0xff]
        %v397 = vld [vmem:[%s243 + $0x2d0] sm:$0xff]
        %v398 = vld [vmem:[%s243 + $0x2d8] sm:$0xff]
        %v399 = vld [vmem:[%s243 + $0x2e0] sm:$0xff]
        %v400 = vld [vmem:[%s243 + $0x2e8] sm:$0xff]
        %v401 = vld [vmem:[%s243 + $0x2f0] sm:$0xff]
        %v402 = vld [vmem:[%s243 + $0x2f8] sm:$0xff]
        %v403 = vld [vmem:[%s243 + $0x300] sm:$0xff]
        %v404 = vld [vmem:[%s243 + $0x308] sm:$0xff]
        %v405 = vld [vmem:[%s243 + $0x310] sm:$0xff]
        %v406 = vld [vmem:[%s243 + $0x318] sm:$0xff]
        %v407 = vld [vmem:[%s243 + $0x320] sm:$0xff]
        %v408 = vld [vmem:[%s243 + $0x328] sm:$0xff]
        %v409 = vld [vmem:[%s243 + $0x330] sm:$0xff]
        %v410 = vld [vmem:[%s243 + $0x338] sm:$0xff]
        %v411 = vld [vmem:[%s243 + $0x340] sm:$0xff]
        %v412 = vld [vmem:[%s243 + $0x348] sm:$0xff]
        %v413 = vld [vmem:[%s243 + $0x350] sm:$0xff]
        %v414 = vld [vmem:[%s243 + $0x358] sm:$0xff]
        %v415 = vld [vmem:[%s243 + $0x360] sm:$0xff]
        %v416 = vld [vmem:[%s243 + $0x368] sm:$0xff]
        %v417 = vld [vmem:[%s243 + $0x370] sm:$0xff]
        %v418 = vld [vmem:[%s243 + $0x378] sm:$0xff]
        %v419 = vld [vmem:[%s243 + $0x380] sm:$0xff]
        %v420 = vld [vmem:[%s243 + $0x388] sm:$0xff]
        %v421 = vld [vmem:[%s243 + $0x390] sm:$0xff]
        %v422 = vld [vmem:[%s243 + $0x398] sm:$0xff]
        %v423 = vld [vmem:[%s243 + $0x3a0] sm:$0xff]
        %v424 = vld [vmem:[%s243 + $0x3a8] sm:$0xff]
        %v425 = vld [vmem:[%s243 + $0x3b0] sm:$0xff]
        %v426 = vld [vmem:[%s243 + $0x3b8] sm:$0xff]
        %v427 = vld [vmem:[%s243 + $0x3c0] sm:$0xff]
        %v428 = vld [vmem:[%s243 + $0x3c8] sm:$0xff]
        %v429 = vld [vmem:[%s243 + $0x3d0] sm:$0xff]
        %v430 = vld [vmem:[%s243 + $0x3d8] sm:$0xff]
        %v431 = vld [vmem:[%s243 + $0x3e0] sm:$0xff]
        %v432 = vld [vmem:[%s243 + $0x3e8] sm:$0xff]
        %v433 = vld [vmem:[%s243 + $0x3f0] sm:$0xff]
        %v434 = vld [vmem:[%s243 + $0x3f8] sm:$0xff]
        %v435 = vld [vmem:[%s253] sm:$0xff]
        %v436 = vld [vmem:[%s253 + $0x8] sm:$0xff]
        %v437 = vld [vmem:[%s253 + $0x10] sm:$0xff]
        %v438 = vld [vmem:[%s253 + $0x18] sm:$0xff]
        %v439 = vld [vmem:[%s253 + $0x20] sm:$0xff]
        %v440 = vld [vmem:[%s253 + $0x28] sm:$0xff]
        %v441 = vld [vmem:[%s253 + $0x30] sm:$0xff]
        %v442 = vld [vmem:[%s253 + $0x38] sm:$0xff]
        %v443 = vld [vmem:[%s253 + $0x40] sm:$0xff]
        %v444 = vld [vmem:[%s253 + $0x48] sm:$0xff]
        %v445 = vld [vmem:[%s253 + $0x50] sm:$0xff]
        %v446 = vld [vmem:[%s253 + $0x58] sm:$0xff]
        %v447 = vld [vmem:[%s253 + $0x60] sm:$0xff]
        %v448 = vld [vmem:[%s253 + $0x68] sm:$0xff]
        %v449 = vld [vmem:[%s253 + $0x70] sm:$0xff]
        %v450 = vld [vmem:[%s253 + $0x78] sm:$0xff]
        %v451 = vld [vmem:[%s253 + $0x80] sm:$0xff]
        %v452 = vld [vmem:[%s253 + $0x88] sm:$0xff]
        %v453 = vld [vmem:[%s253 + $0x90] sm:$0xff]
        %v454 = vld [vmem:[%s253 + $0x98] sm:$0xff]
        %v455 = vld [vmem:[%s253 + $0xa0] sm:$0xff]
        %v456 = vld [vmem:[%s253 + $0xa8] sm:$0xff]
        %v457 = vld [vmem:[%s253 + $0xb0] sm:$0xff]
        %v458 = vld [vmem:[%s253 + $0xb8] sm:$0xff]
        %v459 = vld [vmem:[%s253 + $0xc0] sm:$0xff]
        %v460 = vld [vmem:[%s253 + $0xc8] sm:$0xff]
        %v461 = vld [vmem:[%s253 + $0xd0] sm:$0xff]
        %v462 = vld [vmem:[%s253 + $0xd8] sm:$0xff]
        %v463 = vld [vmem:[%s253 + $0xe0] sm:$0xff]
        %v464 = vld [vmem:[%s253 + $0xe8] sm:$0xff]
        %v465 = vld [vmem:[%s253 + $0xf0] sm:$0xff]
        %v466 = vld [vmem:[%s253 + $0xf8] sm:$0xff]
        %v467 = vld [vmem:[%s253 + $0x100] sm:$0xff]
        %v468 = vld [vmem:[%s253 + $0x108] sm:$0xff]
        %v469 = vld [vmem:[%s253 + $0x110] sm:$0xff]
        %v470 = vld [vmem:[%s253 + $0x118] sm:$0xff]
        %v471 = vld [vmem:[%s253 + $0x120] sm:$0xff]
        %v472 = vld [vmem:[%s253 + $0x128] sm:$0xff]
        %v473 = vld [vmem:[%s253 + $0x130] sm:$0xff]
        %v474 = vld [vmem:[%s253 + $0x138] sm:$0xff]
        %v475 = vld [vmem:[%s253 + $0x140] sm:$0xff]
        %v476 = vld [vmem:[%s253 + $0x148] sm:$0xff]
        %v477 = vld [vmem:[%s253 + $0x150] sm:$0xff]
        %v478 = vld [vmem:[%s253 + $0x158] sm:$0xff]
        %v479 = vld [vmem:[%s253 + $0x160] sm:$0xff]
        %v480 = vld [vmem:[%s253 + $0x168] sm:$0xff]
        %v481 = vld [vmem:[%s253 + $0x170] sm:$0xff]
        %v482 = vld [vmem:[%s253 + $0x178] sm:$0xff]
        %v483 = vld [vmem:[%s253 + $0x180] sm:$0xff]
        %v484 = vld [vmem:[%s253 + $0x188] sm:$0xff]
        %v485 = vld [vmem:[%s253 + $0x190] sm:$0xff]
        %v486 = vld [vmem:[%s253 + $0x198] sm:$0xff]
        %v487 = vld [vmem:[%s253 + $0x1a0] sm:$0xff]
        %v488 = vld [vmem:[%s253 + $0x1a8] sm:$0xff]
        %v489 = vld [vmem:[%s253 + $0x1b0] sm:$0xff]
        %v490 = vld [vmem:[%s253 + $0x1b8] sm:$0xff]
        %v491 = vld [vmem:[%s253 + $0x1c0] sm:$0xff]
        %v492 = vld [vmem:[%s253 + $0x1c8] sm:$0xff]
        %v493 = vld [vmem:[%s253 + $0x1d0] sm:$0xff]
        %v494 = vld [vmem:[%s253 + $0x1d8] sm:$0xff]
        %v495 = vld [vmem:[%s253 + $0x1e0] sm:$0xff]
        %v496 = vld [vmem:[%s253 + $0x1e8] sm:$0xff]
        %v497 = vld [vmem:[%s253 + $0x1f0] sm:$0xff]
        %v498 = vld [vmem:[%s253 + $0x1f8] sm:$0xff]
        %v499 = vld [vmem:[%s253 + $0x200] sm:$0xff]
        %v500 = vld [vmem:[%s253 + $0x208] sm:$0xff]
        %v501 = vld [vmem:[%s253 + $0x210] sm:$0xff]
        %v502 = vld [vmem:[%s253 + $0x218] sm:$0xff]
        %v503 = vld [vmem:[%s253 + $0x220] sm:$0xff]
        %v504 = vld [vmem:[%s253 + $0x228] sm:$0xff]
        %v505 = vld [vmem:[%s253 + $0x230] sm:$0xff]
        %v506 = vld [vmem:[%s253 + $0x238] sm:$0xff]
        %v507 = vld [vmem:[%s253 + $0x240] sm:$0xff]
        %v508 = vld [vmem:[%s253 + $0x248] sm:$0xff]
        %v509 = vld [vmem:[%s253 + $0x250] sm:$0xff]
        %v510 = vld [vmem:[%s253 + $0x258] sm:$0xff]
        %v511 = vld [vmem:[%s253 + $0x260] sm:$0xff]
        %v512 = vld [vmem:[%s253 + $0x268] sm:$0xff]
        %v513 = vld [vmem:[%s253 + $0x270] sm:$0xff]
        %v514 = vld [vmem:[%s253 + $0x278] sm:$0xff]
        %v515 = vld [vmem:[%s253 + $0x280] sm:$0xff]
        %v516 = vld [vmem:[%s253 + $0x288] sm:$0xff]
        %v517 = vld [vmem:[%s253 + $0x290] sm:$0xff]
        %v518 = vld [vmem:[%s253 + $0x298] sm:$0xff]
        %v519 = vld [vmem:[%s253 + $0x2a0] sm:$0xff]
        %v520 = vld [vmem:[%s253 + $0x2a8] sm:$0xff]
        %v521 = vld [vmem:[%s253 + $0x2b0] sm:$0xff]
        %v522 = vld [vmem:[%s253 + $0x2b8] sm:$0xff]
        %v523 = vld [vmem:[%s253 + $0x2c0] sm:$0xff]
        %v524 = vld [vmem:[%s253 + $0x2c8] sm:$0xff]
        %v525 = vld [vmem:[%s253 + $0x2d0] sm:$0xff]
        %v526 = vld [vmem:[%s253 + $0x2d8] sm:$0xff]
        %v527 = vld [vmem:[%s253 + $0x2e0] sm:$0xff]
        %v528 = vld [vmem:[%s253 + $0x2e8] sm:$0xff]
        %v529 = vld [vmem:[%s253 + $0x2f0] sm:$0xff]
        %v530 = vld [vmem:[%s253 + $0x2f8] sm:$0xff]
        %v531 = vld [vmem:[%s253 + $0x300] sm:$0xff]
        %v532 = vld [vmem:[%s253 + $0x308] sm:$0xff]
        %v533 = vld [vmem:[%s253 + $0x310] sm:$0xff]
        %v534 = vld [vmem:[%s253 + $0x318] sm:$0xff]
        %v535 = vld [vmem:[%s253 + $0x320] sm:$0xff]
        %v536 = vld [vmem:[%s253 + $0x328] sm:$0xff]
        %v537 = vld [vmem:[%s253 + $0x330] sm:$0xff]
        %v538 = vld [vmem:[%s253 + $0x338] sm:$0xff]
        %v539 = vld [vmem:[%s253 + $0x340] sm:$0xff]
        %v540 = vld [vmem:[%s253 + $0x348] sm:$0xff]
        %v541 = vld [vmem:[%s253 + $0x350] sm:$0xff]
        %v542 = vld [vmem:[%s253 + $0x358] sm:$0xff]
        %v543 = vld [vmem:[%s253 + $0x360] sm:$0xff]
        %v544 = vld [vmem:[%s253 + $0x368] sm:$0xff]
        %v545 = vld [vmem:[%s253 + $0x370] sm:$0xff]
        %v546 = vld [vmem:[%s253 + $0x378] sm:$0xff]
        %v547 = vld [vmem:[%s253 + $0x380] sm:$0xff]
        %v548 = vld [vmem:[%s253 + $0x388] sm:$0xff]
        %v549 = vld [vmem:[%s253 + $0x390] sm:$0xff]
        %v550 = vld [vmem:[%s253 + $0x398] sm:$0xff]
        %v551 = vld [vmem:[%s253 + $0x3a0] sm:$0xff]
        %v552 = vld [vmem:[%s253 + $0x3a8] sm:$0xff]
        %v553 = vld [vmem:[%s253 + $0x3b0] sm:$0xff]
        %v554 = vld [vmem:[%s253 + $0x3b8] sm:$0xff]
        %v555 = vld [vmem:[%s253 + $0x3c0] sm:$0xff]
        %v556 = vld [vmem:[%s253 + $0x3c8] sm:$0xff]
        %v557 = vld [vmem:[%s253 + $0x3d0] sm:$0xff]
        %v558 = vld [vmem:[%s253 + $0x3d8] sm:$0xff]
        %v559 = vld [vmem:[%s253 + $0x3e0] sm:$0xff]
        %v560 = vld [vmem:[%s253 + $0x3e8] sm:$0xff]
        %v561 = vld [vmem:[%s253 + $0x3f0] sm:$0xff]
        %v562 = vld [vmem:[%s253 + $0x3f8] sm:$0xff]
        %v563 = vsub.f32 %v307, %v435
        %v564 = vsub.f32 %v308, %v436
        %v565 = vsub.f32 %v309, %v437
        %v566 = vsub.f32 %v310, %v438
        %v567 = vsub.f32 %v311, %v439
        %v568 = vsub.f32 %v312, %v440
        %v569 = vsub.f32 %v313, %v441
        %v570 = vsub.f32 %v314, %v442
        %v571 = vsub.f32 %v315, %v443
        %v572 = vsub.f32 %v316, %v444
        %v573 = vsub.f32 %v317, %v445
        %v574 = vsub.f32 %v318, %v446
        %v575 = vsub.f32 %v319, %v447
        %v576 = vsub.f32 %v320, %v448
        %v577 = vsub.f32 %v321, %v449
        %v578 = vsub.f32 %v322, %v450
        %v579 = vsub.f32 %v323, %v451
        %v580 = vsub.f32 %v324, %v452
        %v581 = vsub.f32 %v325, %v453
        %v582 = vsub.f32 %v326, %v454
        %v583 = vsub.f32 %v327, %v455
        %v584 = vsub.f32 %v328, %v456
        %v585 = vsub.f32 %v329, %v457
        %v586 = vsub.f32 %v330, %v458
        %v587 = vsub.f32 %v331, %v459
        %v588 = vsub.f32 %v332, %v460
        %v589 = vsub.f32 %v333, %v461
        %v590 = vsub.f32 %v334, %v462
        %v591 = vsub.f32 %v335, %v463
        %v592 = vsub.f32 %v336, %v464
        %v593 = vsub.f32 %v337, %v465
        %v594 = vsub.f32 %v338, %v466
        %v595 = vsub.f32 %v339, %v467
        %v596 = vsub.f32 %v340, %v468
        %v597 = vsub.f32 %v341, %v469
        %v598 = vsub.f32 %v342, %v470
        %v599 = vsub.f32 %v343, %v471
        %v600 = vsub.f32 %v344, %v472
        %v601 = vsub.f32 %v345, %v473
        %v602 = vsub.f32 %v346, %v474
        %v603 = vsub.f32 %v347, %v475
        %v604 = vsub.f32 %v348, %v476
        %v605 = vsub.f32 %v349, %v477
        %v606 = vsub.f32 %v350, %v478
        %v607 = vsub.f32 %v351, %v479
        %v608 = vsub.f32 %v352, %v480
        %v609 = vsub.f32 %v353, %v481
        %v610 = vsub.f32 %v354, %v482
        %v611 = vsub.f32 %v355, %v483
        %v612 = vsub.f32 %v356, %v484
        %v613 = vsub.f32 %v357, %v485
        %v614 = vsub.f32 %v358, %v486
        %v615 = vsub.f32 %v359, %v487
        %v616 = vsub.f32 %v360, %v488
        %v617 = vsub.f32 %v361, %v489
        %v618 = vsub.f32 %v362, %v490
        %v619 = vsub.f32 %v363, %v491
        %v620 = vsub.f32 %v364, %v492
        %v621 = vsub.f32 %v365, %v493
        %v622 = vsub.f32 %v366, %v494
        %v623 = vsub.f32 %v367, %v495
        %v624 = vsub.f32 %v368, %v496
        %v625 = vsub.f32 %v369, %v497
        %v626 = vsub.f32 %v370, %v498
        %v627 = vsub.f32 %v371, %v499
        %v628 = vsub.f32 %v372, %v500
        %v629 = vsub.f32 %v373, %v501
        %v630 = vsub.f32 %v374, %v502
        %v631 = vsub.f32 %v375, %v503
        %v632 = vsub.f32 %v376, %v504
        %v633 = vsub.f32 %v377, %v505
        %v634 = vsub.f32 %v378, %v506
        %v635 = vsub.f32 %v379, %v507
        %v636 = vsub.f32 %v380, %v508
        %v637 = vsub.f32 %v381, %v509
        %v638 = vsub.f32 %v382, %v510
        %v639 = vsub.f32 %v383, %v511
        %v640 = vsub.f32 %v384, %v512
        %v641 = vsub.f32 %v385, %v513
        %v642 = vsub.f32 %v386, %v514
        %v643 = vsub.f32 %v387, %v515
        %v644 = vsub.f32 %v388, %v516
        %v645 = vsub.f32 %v389, %v517
        %v646 = vsub.f32 %v390, %v518
        %v647 = vsub.f32 %v391, %v519
        %v648 = vsub.f32 %v392, %v520
        %v649 = vsub.f32 %v393, %v521
        %v650 = vsub.f32 %v394, %v522
        %v651 = vsub.f32 %v395, %v523
        %v652 = vsub.f32 %v396, %v524
        %v653 = vsub.f32 %v397, %v525
        %v654 = vsub.f32 %v398, %v526
        %v655 = vsub.f32 %v399, %v527
        %v656 = vsub.f32 %v400, %v528
        %v657 = vsub.f32 %v401, %v529
        %v658 = vsub.f32 %v402, %v530
        %v659 = vsub.f32 %v403, %v531
        %v660 = vsub.f32 %v404, %v532
        %v661 = vsub.f32 %v405, %v533
        %v662 = vsub.f32 %v406, %v534
        %v663 = vsub.f32 %v407, %v535
        %v664 = vsub.f32 %v408, %v536
        %v665 = vsub.f32 %v409, %v537
        %v666 = vsub.f32 %v410, %v538
        %v667 = vsub.f32 %v411, %v539
        %v668 = vsub.f32 %v412, %v540
        %v669 = vsub.f32 %v413, %v541
        %v670 = vsub.f32 %v414, %v542
        %v671 = vsub.f32 %v415, %v543
        %v672 = vsub.f32 %v416, %v544
        %v673 = vsub.f32 %v417, %v545
        %v674 = vsub.f32 %v418, %v546
        %v675 = vsub.f32 %v419, %v547
        %v676 = vsub.f32 %v420, %v548
        %v677 = vsub.f32 %v421, %v549
        %v678 = vsub.f32 %v422, %v550
        %v679 = vsub.f32 %v423, %v551
        %v680 = vsub.f32 %v424, %v552
        %v681 = vsub.f32 %v425, %v553
        %v682 = vsub.f32 %v426, %v554
        %v683 = vsub.f32 %v427, %v555
        %v684 = vsub.f32 %v428, %v556
        %v685 = vsub.f32 %v429, %v557
        %v686 = vsub.f32 %v430, %v558
        %v687 = vsub.f32 %v431, %v559
        %v688 = vsub.f32 %v432, %v560
        %v689 = vsub.f32 %v433, %v561
        %v690 = vsub.f32 %v434, %v562
        %691 = vst [vmem:[%s279] sm:$0xff] %v563
        %692 = vst [vmem:[%s279 + $0x8] sm:$0xff] %v564
        %693 = vst [vmem:[%s279 + $0x10] sm:$0xff] %v565
        %694 = vst [vmem:[%s279 + $0x18] sm:$0xff] %v566
        %695 = vst [vmem:[%s279 + $0x20] sm:$0xff] %v567
        %696 = vst [vmem:[%s279 + $0x28] sm:$0xff] %v568
        %697 = vst [vmem:[%s279 + $0x30] sm:$0xff] %v569
        %698 = vst [vmem:[%s279 + $0x38] sm:$0xff] %v570
        %699 = vst [vmem:[%s279 + $0x40] sm:$0xff] %v571
        %700 = vst [vmem:[%s279 + $0x48] sm:$0xff] %v572
        %701 = vst [vmem:[%s279 + $0x50] sm:$0xff] %v573
        %702 = vst [vmem:[%s279 + $0x58] sm:$0xff] %v574
        %703 = vst [vmem:[%s279 + $0x60] sm:$0xff] %v575
        %704 = vst [vmem:[%s279 + $0x68] sm:$0xff] %v576
        %705 = vst [vmem:[%s279 + $0x70] sm:$0xff] %v577
        %706 = vst [vmem:[%s279 + $0x78] sm:$0xff] %v578
        %707 = vst [vmem:[%s279 + $0x80] sm:$0xff] %v579
        %708 = vst [vmem:[%s279 + $0x88] sm:$0xff] %v580
        %709 = vst [vmem:[%s279 + $0x90] sm:$0xff] %v581
        %710 = vst [vmem:[%s279 + $0x98] sm:$0xff] %v582
        %711 = vst [vmem:[%s279 + $0xa0] sm:$0xff] %v583
        %712 = vst [vmem:[%s279 + $0xa8] sm:$0xff] %v584
        %713 = vst [vmem:[%s279 + $0xb0] sm:$0xff] %v585
        %714 = vst [vmem:[%s279 + $0xb8] sm:$0xff] %v586
        %715 = vst [vmem:[%s279 + $0xc0] sm:$0xff] %v587
        %716 = vst [vmem:[%s279 + $0xc8] sm:$0xff] %v588
        %717 = vst [vmem:[%s279 + $0xd0] sm:$0xff] %v589
        %718 = vst [vmem:[%s279 + $0xd8] sm:$0xff] %v590
        %719 = vst [vmem:[%s279 + $0xe0] sm:$0xff] %v591
        %720 = vst [vmem:[%s279 + $0xe8] sm:$0xff] %v592
        %721 = vst [vmem:[%s279 + $0xf0] sm:$0xff] %v593
        %722 = vst [vmem:[%s279 + $0xf8] sm:$0xff] %v594
        %723 = vst [vmem:[%s279 + $0x100] sm:$0xff] %v595
        %724 = vst [vmem:[%s279 + $0x108] sm:$0xff] %v596
        %725 = vst [vmem:[%s279 + $0x110] sm:$0xff] %v597
        %726 = vst [vmem:[%s279 + $0x118] sm:$0xff] %v598
        %727 = vst [vmem:[%s279 + $0x120] sm:$0xff] %v599
        %728 = vst [vmem:[%s279 + $0x128] sm:$0xff] %v600
        %729 = vst [vmem:[%s279 + $0x130] sm:$0xff] %v601
        %730 = vst [vmem:[%s279 + $0x138] sm:$0xff] %v602
        %731 = vst [vmem:[%s279 + $0x140] sm:$0xff] %v603
        %732 = vst [vmem:[%s279 + $0x148] sm:$0xff] %v604
        %733 = vst [vmem:[%s279 + $0x150] sm:$0xff] %v605
        %734 = vst [vmem:[%s279 + $0x158] sm:$0xff] %v606
        %735 = vst [vmem:[%s279 + $0x160] sm:$0xff] %v607
        %736 = vst [vmem:[%s279 + $0x168] sm:$0xff] %v608
        %737 = vst [vmem:[%s279 + $0x170] sm:$0xff] %v609
        %738 = vst [vmem:[%s279 + $0x178] sm:$0xff] %v610
        %739 = vst [vmem:[%s279 + $0x180] sm:$0xff] %v611
        %740 = vst [vmem:[%s279 + $0x188] sm:$0xff] %v612
        %741 = vst [vmem:[%s279 + $0x190] sm:$0xff] %v613
        %742 = vst [vmem:[%s279 + $0x198] sm:$0xff] %v614
        %743 = vst [vmem:[%s279 + $0x1a0] sm:$0xff] %v615
        %744 = vst [vmem:[%s279 + $0x1a8] sm:$0xff] %v616
        %745 = vst [vmem:[%s279 + $0x1b0] sm:$0xff] %v617
        %746 = vst [vmem:[%s279 + $0x1b8] sm:$0xff] %v618
        %747 = vst [vmem:[%s279 + $0x1c0] sm:$0xff] %v619
        %748 = vst [vmem:[%s279 + $0x1c8] sm:$0xff] %v620
        %749 = vst [vmem:[%s279 + $0x1d0] sm:$0xff] %v621
        %750 = vst [vmem:[%s279 + $0x1d8] sm:$0xff] %v622
        %751 = vst [vmem:[%s279 + $0x1e0] sm:$0xff] %v623
        %752 = vst [vmem:[%s279 + $0x1e8] sm:$0xff] %v624
        %753 = vst [vmem:[%s279 + $0x1f0] sm:$0xff] %v625
        %754 = vst [vmem:[%s279 + $0x1f8] sm:$0xff] %v626
        %755 = vst [vmem:[%s279 + $0x200] sm:$0xff] %v627
        %756 = vst [vmem:[%s279 + $0x208] sm:$0xff] %v628
        %757 = vst [vmem:[%s279 + $0x210] sm:$0xff] %v629
        %758 = vst [vmem:[%s279 + $0x218] sm:$0xff] %v630
        %759 = vst [vmem:[%s279 + $0x220] sm:$0xff] %v631
        %760 = vst [vmem:[%s279 + $0x228] sm:$0xff] %v632
        %761 = vst [vmem:[%s279 + $0x230] sm:$0xff] %v633
        %762 = vst [vmem:[%s279 + $0x238] sm:$0xff] %v634
        %763 = vst [vmem:[%s279 + $0x240] sm:$0xff] %v635
        %764 = vst [vmem:[%s279 + $0x248] sm:$0xff] %v636
        %765 = vst [vmem:[%s279 + $0x250] sm:$0xff] %v637
        %766 = vst [vmem:[%s279 + $0x258] sm:$0xff] %v638
        %767 = vst [vmem:[%s279 + $0x260] sm:$0xff] %v639
        %768 = vst [vmem:[%s279 + $0x268] sm:$0xff] %v640
        %769 = vst [vmem:[%s279 + $0x270] sm:$0xff] %v641
        %770 = vst [vmem:[%s279 + $0x278] sm:$0xff] %v642
        %771 = vst [vmem:[%s279 + $0x280] sm:$0xff] %v643
        %772 = vst [vmem:[%s279 + $0x288] sm:$0xff] %v644
        %773 = vst [vmem:[%s279 + $0x290] sm:$0xff] %v645
        %774 = vst [vmem:[%s279 + $0x298] sm:$0xff] %v646
        %775 = vst [vmem:[%s279 + $0x2a0] sm:$0xff] %v647
        %776 = vst [vmem:[%s279 + $0x2a8] sm:$0xff] %v648
        %777 = vst [vmem:[%s279 + $0x2b0] sm:$0xff] %v649
        %778 = vst [vmem:[%s279 + $0x2b8] sm:$0xff] %v650
        %779 = vst [vmem:[%s279 + $0x2c0] sm:$0xff] %v651
        %780 = vst [vmem:[%s279 + $0x2c8] sm:$0xff] %v652
        %781 = vst [vmem:[%s279 + $0x2d0] sm:$0xff] %v653
        %782 = vst [vmem:[%s279 + $0x2d8] sm:$0xff] %v654
        %783 = vst [vmem:[%s279 + $0x2e0] sm:$0xff] %v655
        %784 = vst [vmem:[%s279 + $0x2e8] sm:$0xff] %v656
        %785 = vst [vmem:[%s279 + $0x2f0] sm:$0xff] %v657
        %786 = vst [vmem:[%s279 + $0x2f8] sm:$0xff] %v658
        %787 = vst [vmem:[%s279 + $0x300] sm:$0xff] %v659
        %788 = vst [vmem:[%s279 + $0x308] sm:$0xff] %v660
        %789 = vst [vmem:[%s279 + $0x310] sm:$0xff] %v661
        %790 = vst [vmem:[%s279 + $0x318] sm:$0xff] %v662
        %791 = vst [vmem:[%s279 + $0x320] sm:$0xff] %v663
        %792 = vst [vmem:[%s279 + $0x328] sm:$0xff] %v664
        %793 = vst [vmem:[%s279 + $0x330] sm:$0xff] %v665
        %794 = vst [vmem:[%s279 + $0x338] sm:$0xff] %v666
        %795 = vst [vmem:[%s279 + $0x340] sm:$0xff] %v667
        %796 = vst [vmem:[%s279 + $0x348] sm:$0xff] %v668
        %797 = vst [vmem:[%s279 + $0x350] sm:$0xff] %v669
        %798 = vst [vmem:[%s279 + $0x358] sm:$0xff] %v670
        %799 = vst [vmem:[%s279 + $0x360] sm:$0xff] %v671
        %800 = vst [vmem:[%s279 + $0x368] sm:$0xff] %v672
        %801 = vst [vmem:[%s279 + $0x370] sm:$0xff] %v673
        %802 = vst [vmem:[%s279 + $0x378] sm:$0xff] %v674
        %803 = vst [vmem:[%s279 + $0x380] sm:$0xff] %v675
        %804 = vst [vmem:[%s279 + $0x388] sm:$0xff] %v676
        %805 = vst [vmem:[%s279 + $0x390] sm:$0xff] %v677
        %806 = vst [vmem:[%s279 + $0x398] sm:$0xff] %v678
        %807 = vst [vmem:[%s279 + $0x3a0] sm:$0xff] %v679
        %808 = vst [vmem:[%s279 + $0x3a8] sm:$0xff] %v680
        %809 = vst [vmem:[%s279 + $0x3b0] sm:$0xff] %v681
        %810 = vst [vmem:[%s279 + $0x3b8] sm:$0xff] %v682
        %811 = vst [vmem:[%s279 + $0x3c0] sm:$0xff] %v683
        %812 = vst [vmem:[%s279 + $0x3c8] sm:$0xff] %v684
        %813 = vst [vmem:[%s279 + $0x3d0] sm:$0xff] %v685
        %814 = vst [vmem:[%s279 + $0x3d8] sm:$0xff] %v686
        %815 = vst [vmem:[%s279 + $0x3e0] sm:$0xff] %v687
        %816 = vst [vmem:[%s279 + $0x3e8] sm:$0xff] %v688
        %817 = vst [vmem:[%s279 + $0x3f0] sm:$0xff] %v689
        %818 = vst [vmem:[%s279 + $0x3f8] sm:$0xff] %v690
        %s819 = sand.u32 %s130, 1
        %s820 = scalar_lea.sflag [#allocation4], %s819
        %s821 = sand.u32 %s130, 1
        %s822 = smul.addr %s821, 1024
        %s823 = scalar_lea.vmem [#allocation7], %s822
        // Predicated region
        $region37: #{tpu_custom_call.1} parent=27 // pred_check
          %p824 = pneg %p140
        $region38: #{tpu_custom_call.1} parent=27 // pred_check_branch
          %826 = sbr.rel (%p824) target = $region40
        $region39: #{tpu_custom_call.1} parent=27 // pred_region
          %s827 = smul.u32 16, %s22
          %829 = vsyncadd %s820, 0
          %s830 = smul.addr %s827, 8
          %s831 = smul.addr %s830, 8
          %s832 = scalar_lea.hbm %s2, %s831
          %s833 = sshll.u32 %s823, 4
          %s834 = int_to_ptr.vmem [resolvable:$true] %s833
          %s835 = sshll.u32 %s832, 4
          %s836 = int_to_ptr.hbm [resolvable:$true] %s835
          %841 = dma.vmem_to_hbm [thread:$0]  %s834, 16384, %s836, %s820, 1024, 1024, 64
        $region40: #{tpu_custom_call.1} parent=27 // pred_fallthru
          _
      $region28: #{tpu_custom_call.1} parent=5 // pred_fallthru
        _
      %p842 = scmp.le.s32.totalorder 2, %s17
      // Predicated region
      $region41: #{tpu_custom_call.1} parent=5 // pred_check
        %p843 = pneg %p842
      $region42: #{tpu_custom_call.1} parent=5 // pred_check_branch
        %845 = sbr.rel (%p843) target = $region44
      $region43: #{tpu_custom_call.1} parent=5 // pred_region
        %s846 = ssub.s32 %s17, 2
        // Predicated region
        $region45: #{tpu_custom_call.1} parent=43 // pred_check
          %p847 = pneg %p146
        $region46: #{tpu_custom_call.1} parent=43 // pred_check_branch
          %849 = sbr.rel (%p847) target = $region48
        $region47: #{tpu_custom_call.1} parent=43 // pred_region
          %s850 = sand.u32 %s131, 1
          %s851 = scalar_lea.sflag [#allocation4], %s850
          %s852 = sand.u32 %s131, 1
          %s853 = smul.addr %s852, 1024
          %s854 = scalar_lea.vmem [#allocation7], %s853
          %856 = dma.done %s851, 16384
        $region48: #{tpu_custom_call.1} parent=43 // pred_fallthru
          _
      $region44: #{tpu_custom_call.1} parent=5 // pred_fallthru
        _
    $region6: #{tpu_custom_call.1} parent=1 // loop_footer
      %s21 = sadd.s32 1, %s17
    $region7: #{tpu_custom_call.1} parent=1 // loop_footer_branch
      %16 = sbr.rel target = $region3
    $region8: #{tpu_custom_call.1} parent=1 // loop_exit
      _
    %857 = vsyncpa [#allocation3], 1
    %s858 = scalar_lea.sflag [#allocation3], 1
    %859 = vsyncpa %s858, 1
    %860 = vsyncpa [#allocation6], 1
    %s861 = scalar_lea.sflag [#allocation6], 1
    %862 = vsyncpa %s861, 1
    %863 = vsyncpa [#allocation4], 1
    %s864 = scalar_lea.sflag [#allocation4], 1
    %865 = vsyncpa %s864, 1

</llo_original>
